<compile_context>
chip_gen: v6e
topology: v6e:2x2x1
jax: 0.10.0
libtpu: 0.0.40
codegen_flags: <defaults>
</compile_context>

<pallas_src>
import functools

import jax
import jax.numpy as jnp
from jax.experimental import pallas as pl
from jax.experimental.pallas import tpu as pltpu


_LANE = 128
# Widest lane (last) dims to try on the aligned fast path, all multiples of
# 128: long contiguous rows -> fewer DMA descriptors, unmasked wide vst.
_LANE_WIDTHS = (8192, 4096, 2048, 1024, 512, 256, 128)


def _h_swish_kernel(x_ref, o_ref):
    x = x_ref[...]
    # h_sigmoid(x) = relu6(x + 3) / 6  ==  clip(x + 3, 0, 6) * (1/6)
    hs = jnp.clip(x + 3.0, 0.0, 6.0) * (1.0 / 6.0)
    o_ref[...] = (x * hs).astype(o_ref.dtype)


def _round_up(v: int, m: int) -> int:
    return ((v + m - 1) // m) * m


def _sublanes_for(dtype) -> int:
    itemsize = jnp.dtype(dtype).itemsize
    if itemsize >= 4:
        return 8
    if itemsize == 2:
        return 16
    return 32


@functools.lru_cache(maxsize=None)
def _device_tuning():
    """Per-generation (target_block_bytes, vmem_limit_bytes, num_tensorcores)."""
    kind = ""
    try:
        kind = jax.devices()[0].device_kind.lower()
    except Exception:  # pragma: no cover - defensive; fall through to defaults
        pass
    if "v7" in kind or "7x" in kind:
        # 2 TCs/chip, 64 MiB physical VMEM, 3.2 TB/s HBM.
        return 6 * 1024 * 1024, 40 * 1024 * 1024, 2
    if "v6" in kind or "6e" in kind:
        # 1 TC, 128 MiB physical VMEM; 32 MiB scoped default -> raise it.
        return 4 * 1024 * 1024, 48 * 1024 * 1024, 1
    if "v5e" in kind or "v5 lite" in kind or "v5lite" in kind:
        # 1 TC, 16 MiB scoped default; 2 MiB blocks already hide step overhead.
        return 2 * 1024 * 1024, None, 1
    # Unknown generation (v4/v5p/interpret): conservative defaults.
    return 2 * 1024 * 1024, None, 1


def _tile_and_grid(rows, row_bytes, sublanes, target_block_bytes, num_tc):
    """Rows-per-block and grid size for a (rows, C) slab tiled along rows only."""
    if rows <= sublanes or rows * row_bytes <= target_block_bytes:
        tile, grid = rows, 1
    else:
        rows_per_block = max(sublanes, target_block_bytes // max(row_bytes, 1))
        tile = max(sublanes, (min(rows, rows_per_block) // sublanes) * sublanes)
        grid = pl.cdiv(rows, tile)

    if num_tc >= 2:
        # Only on 2-TensorCore chips (v7x): make sure both cores get work and
        # that small grids are evenly balanced.
        if grid == 1 and rows >= 2 * sublanes:
            tile = max(sublanes, _round_up(pl.cdiv(rows, 2), sublanes))
            grid = pl.cdiv(rows, tile)
        elif 2 <= grid <= 8 and grid % 2 == 1:
            cand_tile = max(sublanes, _round_up(pl.cdiv(rows, grid + 1), sublanes))
            cand_grid = pl.cdiv(rows, cand_tile)
            if cand_grid % 2 == 0:
                tile, grid = cand_tile, cand_grid
    return tile, grid


def _run_2d(x2d, sublanes, target_block_bytes, vmem_limit, num_tc):
    """Run the elementwise kernel over a 2-D slab, tiling only the row axis."""
    rows, cols = x2d.shape
    itemsize = jnp.dtype(x2d.dtype).itemsize
    # VMEM-layout bytes per row (lane dim padded up to 128 inside VMEM).
    row_bytes = _round_up(cols, _LANE) * itemsize
    tile_rows, grid_size = _tile_and_grid(
        rows, row_bytes, sublanes, target_block_bytes, num_tc)

    return pl.pallas_call(
        _h_swish_kernel,
        out_shape=jax.ShapeDtypeStruct((rows, cols), x2d.dtype),
        grid_spec=pltpu.PrefetchScalarGridSpec(
            num_scalar_prefetch=0,
            grid=(grid_size,),
            in_specs=[pl.BlockSpec((tile_rows, cols), lambda i: (i, 0))],
            out_specs=pl.BlockSpec((tile_rows, cols), lambda i: (i, 0)),
        ),
        compiler_params=pltpu.CompilerParams(
            # On v7x the parallel grid axis is sharded across both TCs.
            # TODO(synk): verify in an xprof profile that 'parallel' core-shards
            # the 1-D grid on v7x; if not, switch to pltpu.CORE_PARALLEL.
            dimension_semantics=("parallel",),
            vmem_limit_bytes=vmem_limit,
        ),
    )(x2d)


def h_swish(x: jax.Array) -> jax.Array:
    """Elementwise hard-swish: x * relu6(x + 3) / 6. Accepts any shape."""
    orig_shape = x.shape
    n = x.size
    if n == 0:
        return x

    target_block_bytes, vmem_limit, num_tc = _device_tuning()
    sublanes = _sublanes_for(x.dtype)
    itemsize = jnp.dtype(x.dtype).itemsize

    if n % _LANE == 0:
        # Fast path: free reshape to the widest lane-dense slab (wide,
        # unmasked vst; minimal DMA descriptors).
        lane_w = next(w for w in _LANE_WIDTHS if n % w == 0)
        x2d = x.reshape(n // lane_w, lane_w)
        out2d = _run_2d(x2d, sublanes, target_block_bytes, vmem_limit, num_tc)
        return out2d.reshape(orig_shape)

    # Non-lane-aligned path: collapse the leading dims (free reshape), keep the
    # original (unaligned) last dim whole as the lane dim and tile rows only.
    # The ragged last row-block is masked by Pallas -> one HBM read + write,
    # no whole-array pad/slice passes.
    cols = orig_shape[-1] if x.ndim >= 2 else n
    rows = n // cols
    min_block_bytes = min(rows, sublanes) * _round_up(cols, _LANE) * itemsize
    if min_block_bytes <= 4 * target_block_bytes:
        x2d = x.reshape(rows, cols)
        out2d = _run_2d(x2d, sublanes, target_block_bytes, vmem_limit, num_tc)
        return out2d.reshape(orig_shape)

    # Rare fallback: a single unaligned row is too big for one VMEM block
    # (e.g. an enormous unaligned 1-D tensor). Pad to a lane multiple, run the
    # fast slab kernel, then slice back.
    # TODO(synk): replace with a manual-DMA (pl.ANY + pl.BoundedSlice) tail path
    # to avoid the extra pad/slice HBM passes in this corner case.
    flat = x.reshape(-1)
    n_work = _round_up(n, sublanes * _LANE)
    flat = jnp.pad(flat, (0, n_work - n))
    lane_w = next(w for w in _LANE_WIDTHS if n_work % w == 0)
    x2d = flat.reshape(n_work // lane_w, lane_w)
    out2d = _run_2d(x2d, sublanes, target_block_bytes, vmem_limit, num_tc)
    return out2d.reshape(-1)[:n].reshape(orig_shape)


def h_swish_ref(x: jax.Array) -> jax.Array:
    """Pure-JAX reference matching PyTorch semantics."""
    return x * (jnp.clip(x + 3.0, 0.0, 6.0) / 6.0)


if __name__ == "__main__":
    key = jax.random.PRNGKey(0)

    # Main case: NCHW activation, lane-aligned fast path (no pad, no slice).
    x = jax.random.normal(key, (2, 4, 16, 16), dtype=jnp.float32)
    out = jax.block_until_ready(h_swish(x))
    ref = h_swish_ref(x)
    assert out.shape == x.shape and out.dtype == x.dtype
    assert jnp.allclose(out, ref, atol=1e-6, rtol=1e-6)

    # Non-lane-aligned shape (exercises the collapsed-2D ragged-row path).
    x2 = jax.random.normal(jax.random.fold_in(key, 1), (2, 3, 7, 5),
                           dtype=jnp.float32)
    out2 = jax.block_until_ready(h_swish(x2))
    assert out2.shape == x2.shape
    assert jnp.allclose(out2, h_swish_ref(x2), atol=1e-6, rtol=1e-6)

    # Larger activation (exercises the wide-lane slab / tiling logic).
    x3 = jax.random.normal(jax.random.fold_in(key, 2), (2, 64, 32, 32),
                           dtype=jnp.float32)
    out3 = jax.block_until_ready(h_swish(x3))
    assert out3.shape == x3.shape
    assert jnp.allclose(out3, h_swish_ref(x3), atol=1e-6, rtol=1e-6)

    print("KERNEL_OK")
</pallas_src>

<mosaic_0001>
module attributes {stable_mosaic.version = 11 : i64} {
  func.func @_h_swish_kernel(%arg0: i32, %arg1: memref<1x2048xf32, #tpu.memory_space<vmem>>, %arg2: memref<1x2048xf32, #tpu.memory_space<vmem>>) attributes {dimension_semantics = [#tpu.dimension_semantics<parallel>], iteration_bounds = array<i64: 1>, scalar_prefetch = 0 : i64, scratch_operands = 0 : i64, tpu.core_type = #tpu.core_type<tc>, window_params = [{transform_indices = @transform_0, window_bounds = array<i64: 1, 2048>}, {transform_indices = @transform_1, window_bounds = array<i64: 1, 2048>}]} {
    %c0 = arith.constant 0 : index
    %c0_0 = arith.constant 0 : index
    %0 = vector.load %arg1[%c0, %c0_0] : memref<1x2048xf32, #tpu.memory_space<vmem>>, vector<1x2048xf32>
    %cst = arith.constant 3.000000e+00 : f32
    %1 = vector.broadcast %cst : f32 to vector<1x2048xf32>
    %2 = arith.addf %0, %1 : vector<1x2048xf32>
    %cst_1 = arith.constant 0.000000e+00 : f32
    %cst_2 = arith.constant 6.000000e+00 : f32
    %3 = vector.broadcast %cst_1 : f32 to vector<1x2048xf32>
    %4 = arith.maximumf %3, %2 : vector<1x2048xf32>
    %5 = vector.broadcast %cst_2 : f32 to vector<1x2048xf32>
    %6 = arith.minimumf %5, %4 : vector<1x2048xf32>
    %cst_3 = arith.constant 0.166666672 : f32
    %7 = vector.broadcast %cst_3 : f32 to vector<1x2048xf32>
    %8 = arith.mulf %6, %7 : vector<1x2048xf32>
    %9 = arith.mulf %0, %8 : vector<1x2048xf32>
    %c0_4 = arith.constant 0 : index
    %c0_5 = arith.constant 0 : index
    %10 = vector.load %arg2[%c0_4, %c0_5] : memref<1x2048xf32, #tpu.memory_space<vmem>>, vector<1x2048xf32>
    tpu.vector_store %arg2[%c0_4, %c0_5], %9 {strides = array<i32>} : memref<1x2048xf32, #tpu.memory_space<vmem>>, vector<1x2048xf32>,
    return
  }
  func.func @transform_0(%arg0: i32) -> (i32, i32) {
    %c0_i32 = arith.constant 0 : i32
    %c0_i32_0 = arith.constant 0 : i32
    return %arg0, %c0_i32 : i32, i32
  }
  func.func @transform_1(%arg0: i32) -> (i32, i32) {
    %c0_i32 = arith.constant 0 : i32
    %c0_i32_0 = arith.constant 0 : i32
    return %arg0, %c0_i32 : i32, i32
  }
}

</mosaic_0001>

<llo_original>
// kernel: tpu_custom_call.1
$region0: #{tpu_custom_call.1}
  #allocation0 [shape = 'u32[]', space=smem, size = 0x4, offset = 0x4, fixed_abs, tag = 'smem constant byte address 0x4 - core index']
  #allocation1 [shape = 'u32[144,128]{1,0:T(1,128)}', space=vmem, size = 0x12000, scoped, tag = 'internal scratch']
  %s0 = inlined_call_operand.hbm [shape: f32[1,2048], index: 0, kind: input, shape index: {}]
  %s1 = inlined_call_operand.hbm [shape: f32[1,2048], index: 1, kind: output, shape index: {}]
  %s2 = sld [smem:[#allocation0]]
  $region18: #{tpu_custom_call.1} parent=0
    _
  %s4 = ssub.s32 1, %s2
  %s5 = scalar_select 0, %s4, %s2
  $region1: #{tpu_custom_call.1} parent=0
    #allocation2 [shape = 'u8[8192]{0}', space=vmem, size = 0x2000, scoped, tag = 'input window, operand 0, single buffered']
    #allocation3 [shape = 's32[1]{0}', space=sflag, size = 0x4, scoped, tag = 'scoped memory for tpu_custom_call.1']
    #allocation4 [shape = 's32[1]{0}', space=sflag, size = 0x4, scoped, tag = 'scoped memory for tpu_custom_call.1']
    #allocation5 [shape = 'u8[8192]{0}', space=vmem, size = 0x2000, scoped, tag = 'output window, operand 0, single buffered']
    %6 = vsyncpa [#allocation3], 0
    %7 = vsyncpa [#allocation4], 0
    // Predicated region
    $region2: #{tpu_custom_call.1} parent=1 // pred_check
      _
    $region3: #{tpu_custom_call.1} parent=1 // pred_check_branch
      %9 = sbr.rel (0) target = $region5
    $region4: #{tpu_custom_call.1} parent=1 // pred_region
      %s11 = ssub.s32 256, 256
      %12 = vsyncadd [#allocation3], %s11
      %s14 = sshll.u32 [#allocation2], 4
      %s15 = int_to_ptr.vmem [resolvable:$true] %s14
      %17 = dma.hbm_to_vmem [thread:$0]  %s0, 256, %s15, [#allocation3]
    $region5: #{tpu_custom_call.1} parent=1 // pred_fallthru
      _
    // Predicated region
    $region6: #{tpu_custom_call.1} parent=1 // pred_check
      _
    $region7: #{tpu_custom_call.1} parent=1 // pred_check_branch
      %19 = sbr.rel (0) target = $region9
    $region8: #{tpu_custom_call.1} parent=1 // pred_region
      %20 = dma.done [#allocation3], 256
    $region9: #{tpu_custom_call.1} parent=1 // pred_fallthru
      _
    %v21 = vld [vmem:[#allocation2] sm:$0xff]
    %v22 = vld [vmem:[#allocation2 + $0x8] sm:$0xff]
    %v23 = vadd.f32 %v21, 3.0
    %v24 = vadd.f32 %v22, 3.0
    %v25 = vmax.f32 %v23, 0.0
    %v26 = vmax.f32 %v24, 0.0
    %v27 = vmin.f32 %v25, 6.0
    %v28 = vmin.f32 %v26, 6.0
    %v29 = vmul.f32 %v27, 0.16666667
    %v30 = vmul.f32 %v28, 0.16666667
    %v31 = vmul.f32 %v21, %v29
    %v32 = vmul.f32 %v22, %v30
    %33 = vst [vmem:[#allocation5] sm:$0xff] %v31
    %34 = vst [vmem:[#allocation5 + $0x8] sm:$0xff] %v32
    // Predicated region
    $region10: #{tpu_custom_call.1} parent=1 // pred_check
      _
    $region11: #{tpu_custom_call.1} parent=1 // pred_check_branch
      %36 = sbr.rel (0) target = $region13
    $region12: #{tpu_custom_call.1} parent=1 // pred_region
      %s38 = ssub.s32 256, 256
      %39 = vsyncadd [#allocation4], %s38
      %s41 = sshll.u32 [#allocation5], 4
      %s42 = int_to_ptr.vmem [resolvable:$true] %s41
      %44 = dma.vmem_to_hbm [thread:$0]  %s42, 256, %s1, [#allocation4]
    $region13: #{tpu_custom_call.1} parent=1 // pred_fallthru
      _
    // Predicated region
    $region14: #{tpu_custom_call.1} parent=1 // pred_check
      _
    $region15: #{tpu_custom_call.1} parent=1 // pred_check_branch
      %46 = sbr.rel (0) target = $region17
    $region16: #{tpu_custom_call.1} parent=1 // pred_region
      %47 = dma.done [#allocation4], 256
    $region17: #{tpu_custom_call.1} parent=1 // pred_fallthru
      _
    %48 = vsyncpa [#allocation3], 1
    %49 = vsyncpa [#allocation4], 1

</llo_original>
